<compile_context>
chip_gen: v7x
topology: tpu7x:2x2x1
jax: 0.10.0
libtpu: 0.0.40
codegen_flags: <defaults>
</compile_context>

<pallas_src>
from types import SimpleNamespace

import jax
import jax.numpy as jnp
from jax.experimental import pallas as pl
from jax.experimental.pallas import tpu as pltpu

_TARGET_BLOCK_BYTES = 2 * 1024 * 1024  # ~2 MiB hidden slab per block


# ----------------------------- tiling helpers --------------------------------

def _choose_tiles(B, S, H, itemsize, target_bytes=_TARGET_BLOCK_BYTES):
    """Pick (batches-per-block, seq-tile) so one hidden block is ~target_bytes."""
    slab = S * H * itemsize  # one batch row's full (S, H) hidden slab
    nb = max(1, min(B, target_bytes // max(1, slab)))
    while B % nb:            # keep nb an exact divisor of B
        nb -= 1
    ts = S
    # Only tile S when even a single batch row overflows the target and the
    # sequence is 128-aligned (mask block lane rule + hidden sublane rule).
    if nb == 1 and slab > target_bytes and S % 128 == 0:
        ts = min(S, max(128, (target_bytes // (H * itemsize)) // 128 * 128))
        while S % ts:
            ts -= 128
    return nb, ts


# ----------------------------- kernels ----------------------------------------

def _cls_kernel(hidden_ref, out_ref):
    # hidden_ref: (NB, SB, H) -- SB is only 8 sublanes; we need just row 0.
    out_ref[...] = hidden_ref[:, 0:1, :]


def _masked_avg_kernel(mask_ref, hidden_ref, out_ref, acc_ref):
    # mask_ref:  (NB, 1, TS) already normalized by the full-sequence mask sum.
    # hidden_ref:(NB, TS, H)
    ks = pl.program_id(1)

    @pl.when(ks == 0)
    def _():
        acc_ref[...] = jnp.zeros_like(acc_ref)

    acc_ref[...] += jnp.einsum(
        "bis,bsh->bih", mask_ref[...], hidden_ref[...],
        preferred_element_type=jnp.float32,
        precision=jax.lax.Precision.HIGHEST)

    @pl.when(ks == pl.num_programs(1) - 1)
    def _():
        out_ref[...] = acc_ref[...].astype(out_ref.dtype)


def _masked_avg2_kernel(mask_ref, h1_ref, h2_ref, out_ref, acc_ref):
    # The 0.5 layer-average factor is folded into mask_ref wrapper-side, so the
    # layer add stays in the input dtype and the contraction runs on the MXU.
    ks = pl.program_id(1)

    @pl.when(ks == 0)
    def _():
        acc_ref[...] = jnp.zeros_like(acc_ref)

    h = h1_ref[...] + h2_ref[...]  # input dtype (bf16 stays bf16)
    acc_ref[...] += jnp.einsum(
        "bis,bsh->bih", mask_ref[...], h,
        preferred_element_type=jnp.float32,
        precision=jax.lax.Precision.HIGHEST)

    @pl.when(ks == pl.num_programs(1) - 1)
    def _():
        out_ref[...] = acc_ref[...].astype(out_ref.dtype)


# ----------------------------- wrappers ----------------------------------------

def _cls_pool(last_hidden):
    B, S, H = last_hidden.shape
    itemsize = jnp.dtype(last_hidden.dtype).itemsize
    sb = 8 if S >= 8 else S  # read only an 8-sublane slab, not the whole sequence
    nb = max(1, min(B, _TARGET_BLOCK_BYTES // max(1, sb * H * itemsize)))
    while B % nb:
        nb -= 1
    out = pl.pallas_call(
        _cls_kernel,
        out_shape=jax.ShapeDtypeStruct((B, 1, H), last_hidden.dtype),
        grid=(B // nb,),
        in_specs=[pl.BlockSpec((nb, sb, H), lambda b: (b, 0, 0))],
        out_specs=pl.BlockSpec((nb, 1, H), lambda b: (b, 0, 0)),
        compiler_params=pltpu.CompilerParams(dimension_semantics=("parallel",)),
    )(last_hidden)
    return out.reshape(B, H)


def _masked_avg_pool(attention_mask, hiddens, scale):
    """Shared wrapper for 'avg' (1 hidden) and 'avg_first_last'/'avg_top2' (2 hiddens)."""
    h0 = hiddens[0]
    B, S, H = h0.shape
    dtype = h0.dtype
    itemsize = jnp.dtype(dtype).itemsize

    # Full-sequence mask sum + layer-average scale folded into the mask once,
    # wrapper-side (avoids per-tile re-reduction and the in-kernel divide).
    m = attention_mask.astype(jnp.float32)
    den = jnp.sum(m, axis=-1, keepdims=True)                 # (B, 1); zero mask -> inf, same as torch
    m_norm = (m * (scale / den)).astype(dtype).reshape(B, 1, S)

    nb, ts = _choose_tiles(B, S, H, itemsize)
    grid = (B // nb, S // ts)

    mask_spec = pl.BlockSpec((nb, 1, ts), lambda ib, ks: (ib, 0, ks))
    hid_spec = pl.BlockSpec((nb, ts, H), lambda ib, ks: (ib, ks, 0))
    out_spec = pl.BlockSpec((nb, 1, H), lambda ib, ks: (ib, 0, 0))

    kernel = _masked_avg_kernel if len(hiddens) == 1 else _masked_avg2_kernel

    out = pl.pallas_call(
        kernel,
        out_shape=jax.ShapeDtypeStruct((B, 1, H), dtype),
        grid_spec=pltpu.PrefetchScalarGridSpec(
            num_scalar_prefetch=0,
            grid=grid,
            in_specs=[mask_spec] + [hid_spec] * len(hiddens),
            out_specs=out_spec,
            scratch_shapes=[pltpu.VMEM((nb, 1, H), jnp.float32)],
        ),
        compiler_params=pltpu.CompilerParams(
            dimension_semantics=("parallel", "arbitrary")),
    )(m_norm, *hiddens)
    return out.reshape(B, H)


def pooler(pooler_type, attention_mask, outputs):
    """JAX/Pallas equivalent of Pooler.forward(attention_mask, outputs)."""
    assert pooler_type in ["cls", "cls_before_pooler", "avg", "avg_top2",
                           "avg_first_last"], "unrecognized pooling type %s" % pooler_type
    last_hidden = outputs.last_hidden_state
    hidden_states = outputs.hidden_states
    if pooler_type in ["cls_before_pooler", "cls"]:
        return _cls_pool(last_hidden)
    elif pooler_type == "avg":
        return _masked_avg_pool(attention_mask, (last_hidden,), scale=1.0)
    elif pooler_type == "avg_first_last":
        return _masked_avg_pool(attention_mask,
                                (hidden_states[0], hidden_states[-1]), scale=0.5)
    elif pooler_type == "avg_top2":
        return _masked_avg_pool(attention_mask,
                                (hidden_states[-1], hidden_states[-2]), scale=0.5)
    else:
        raise NotImplementedError


# ----------------------------- reference (pure JAX) ---------------------------

def pooler_ref(pooler_type, attention_mask, outputs):
    last_hidden = outputs.last_hidden_state
    hidden_states = outputs.hidden_states
    m = attention_mask.astype(jnp.float32)
    if pooler_type in ["cls_before_pooler", "cls"]:
        return last_hidden[:, 0]
    elif pooler_type == "avg":
        return (last_hidden * m[..., None]).sum(1) / m.sum(-1)[..., None]
    elif pooler_type == "avg_first_last":
        h = (hidden_states[0] + hidden_states[-1]) / 2.0
        return (h * m[..., None]).sum(1) / m.sum(-1)[..., None]
    elif pooler_type == "avg_top2":
        h = (hidden_states[-1] + hidden_states[-2]) / 2.0
        return (h * m[..., None]).sum(1) / m.sum(-1)[..., None]
    else:
        raise NotImplementedError


# ----------------------------- main -------------------------------------------

if __name__ == "__main__":
    B, S, H = 2, 8, 32
    n_layers = 3  # hidden_states: embeddings + 2 layers

    key = jax.random.PRNGKey(0)
    keys = jax.random.split(key, n_layers + 1)

    hidden_states = tuple(
        jax.random.normal(keys[i], (B, S, H), dtype=jnp.float32)
        for i in range(n_layers)
    )
    last_hidden_state = hidden_states[-1]
    pooler_output = jax.random.normal(keys[-1], (B, H), dtype=jnp.float32)

    # attention_mask: first row fully valid, second row padded after 5 tokens
    lengths = jnp.array([S, 5], dtype=jnp.int32)
    attention_mask = (jnp.arange(S)[None, :] < lengths[:, None]).astype(jnp.int32)

    outputs = SimpleNamespace(
        last_hidden_state=last_hidden_state,
        pooler_output=pooler_output,
        hidden_states=hidden_states,
    )

    ok = True
    for ptype in ["cls", "cls_before_pooler", "avg", "avg_first_last", "avg_top2"]:
        got = jax.block_until_ready(pooler(ptype, attention_mask, outputs))
        want = pooler_ref(ptype, attention_mask, outputs)
        if got.shape != (B, H) or not jnp.allclose(got, want, atol=1e-5, rtol=1e-5):
            ok = False
            print(f"MISMATCH for pooler_type={ptype}")

    if ok:
        print("KERNEL_OK")
</pallas_src>

<mosaic_0001>
module attributes {stable_mosaic.version = 11 : i64} {
  func.func @_cls_kernel(%arg0: i32, %arg1: memref<2x8x32xf32, #tpu.memory_space<vmem>>, %arg2: memref<2x1x32xf32, #tpu.memory_space<vmem>>) attributes {dimension_semantics = [#tpu.dimension_semantics<parallel>], iteration_bounds = array<i64: 1>, scalar_prefetch = 0 : i64, scratch_operands = 0 : i64, tpu.core_type = #tpu.core_type<tc>, window_params = [{transform_indices = @transform_0, window_bounds = array<i64: 2, 8, 32>}, {transform_indices = @transform_1, window_bounds = array<i64: 2, 1, 32>}]} {
    %c0 = arith.constant 0 : index
    %c0_0 = arith.constant 0 : index
    %c0_1 = arith.constant 0 : index
    %0 = vector.load %arg1[%c0, %c0_0, %c0_1] : memref<2x8x32xf32, #tpu.memory_space<vmem>>, vector<2x1x32xf32>
    %c0_2 = arith.constant 0 : index
    %c0_3 = arith.constant 0 : index
    %c0_4 = arith.constant 0 : index
    %1 = vector.load %arg2[%c0_2, %c0_3, %c0_4] : memref<2x1x32xf32, #tpu.memory_space<vmem>>, vector<2x1x32xf32>
    tpu.vector_store %arg2[%c0_2, %c0_3, %c0_4], %0 {strides = array<i32>} : memref<2x1x32xf32, #tpu.memory_space<vmem>>, vector<2x1x32xf32>,
    return
  }
  func.func @transform_0(%arg0: i32) -> (i32, i32, i32) {
    %c0_i32 = arith.constant 0 : i32
    %c0_i32_0 = arith.constant 0 : i32
    %c0_i32_1 = arith.constant 0 : i32
    return %arg0, %c0_i32, %c0_i32_0 : i32, i32, i32
  }
  func.func @transform_1(%arg0: i32) -> (i32, i32, i32) {
    %c0_i32 = arith.constant 0 : i32
    %c0_i32_0 = arith.constant 0 : i32
    %c0_i32_1 = arith.constant 0 : i32
    return %arg0, %c0_i32, %c0_i32_0 : i32, i32, i32
  }
}

</mosaic_0001>

<llo_original>
// kernel: tpu_custom_call.1
$region0: #{tpu_custom_call.1}
  #allocation0 [shape = 'u32[]', space=smem, size = 0x4, offset = 0x4, fixed_abs, tag = 'smem constant byte address 0x4 - core index']
  #allocation1 [shape = 'u32[144,128]{1,0:T(1,128)}', space=vmem, size = 0x12000, scoped, tag = 'internal scratch']
  %s0 = inlined_call_operand.hbm [shape: f32[2,8,32], index: 0, kind: input, shape index: {}]
  %s1 = inlined_call_operand.hbm [shape: f32[2,1,32], index: 1, kind: output, shape index: {}]
  %s2 = sld [smem:[#allocation0]]
  $region18: #{tpu_custom_call.1} parent=0
    _
  %s4 = ssub.s32 1, %s2
  %s5 = scalar_select 0, %s4, %s2
  $region1: #{tpu_custom_call.1} parent=0
    #allocation2 [shape = 'u8[8192]{0}', space=vmem, size = 0x2000, scoped, tag = 'input window, operand 0, single buffered']
    #allocation3 [shape = 's32[1]{0}', space=sflag, size = 0x4, scoped, tag = 'scoped memory for tpu_custom_call.1']
    #allocation4 [shape = 's32[1]{0}', space=sflag, size = 0x4, scoped, tag = 'scoped memory for tpu_custom_call.1']
    #allocation5 [shape = 'u8[1024]{0}', space=vmem, size = 0x400, scoped, tag = 'output window, operand 0, single buffered']
    %6 = vsyncpa [#allocation3], 0
    %7 = vsyncpa [#allocation4], 0
    // Predicated region
    $region2: #{tpu_custom_call.1} parent=1 // pred_check
      _
    $region3: #{tpu_custom_call.1} parent=1 // pred_check_branch
      %9 = sbr.rel (0) target = $region5
    $region4: #{tpu_custom_call.1} parent=1 // pred_region
      %s11 = ssub.s32 256, 256
      %12 = vsyncadd [#allocation3], %s11
      %s13 = sshll.u32 [#allocation2], 4
      %s14 = int_to_ptr.vmem [resolvable:$true] %s13
      %19 = dma.hbm_to_vmem [thread:$0]  %s0, 256, %s14, [#allocation3], 128, 128, 8
    $region5: #{tpu_custom_call.1} parent=1 // pred_fallthru
      _
    // Predicated region
    $region6: #{tpu_custom_call.1} parent=1 // pred_check
      _
    $region7: #{tpu_custom_call.1} parent=1 // pred_check_branch
      %21 = sbr.rel (0) target = $region9
    $region8: #{tpu_custom_call.1} parent=1 // pred_region
      %22 = dma.done [#allocation3], 256
    $region9: #{tpu_custom_call.1} parent=1 // pred_fallthru
      _
    %v23 = vld [vmem:[#allocation2] sm:$0x1]
    %v24 = vld [vmem:[#allocation2 + $0x8] sm:$0x1]
    %vm25 = vcmask 253952
    %26 = vst.msk [vmem:[#allocation5] sm:$0x1] %vm25, %v23
    %27 = vst.msk [vmem:[#allocation5 + $0x1] sm:$0x1] %vm25, %v24
    // Predicated region
    $region10: #{tpu_custom_call.1} parent=1 // pred_check
      _
    $region11: #{tpu_custom_call.1} parent=1 // pred_check_branch
      %29 = sbr.rel (0) target = $region13
    $region12: #{tpu_custom_call.1} parent=1 // pred_region
      %s31 = ssub.s32 32, 32
      %32 = vsyncadd [#allocation4], %s31
      %s33 = sshll.u32 [#allocation5], 4
      %s34 = int_to_ptr.vmem [resolvable:$true] %s33
      %39 = dma.vmem_to_hbm [thread:$0]  %s34, 32, %s1, [#allocation4], 16, 16, 1
    $region13: #{tpu_custom_call.1} parent=1 // pred_fallthru
      _
    // Predicated region
    $region14: #{tpu_custom_call.1} parent=1 // pred_check
      _
    $region15: #{tpu_custom_call.1} parent=1 // pred_check_branch
      %41 = sbr.rel (0) target = $region17
    $region16: #{tpu_custom_call.1} parent=1 // pred_region
      %42 = dma.done [#allocation4], 32
    $region17: #{tpu_custom_call.1} parent=1 // pred_fallthru
      _
    %43 = vsyncpa [#allocation3], 1
    %44 = vsyncpa [#allocation4], 1

</llo_original>
